<compile_context>
chip_gen: v6e
topology: v6e:2x2x1
jax: 0.10.0
libtpu: 0.0.40
codegen_flags: <defaults>
</compile_context>

<pallas_src>
import jax
import jax.numpy as jnp
from jax import lax
from jax.experimental import pallas as pl
from jax.experimental.pallas import tpu as pltpu

EPS = 1e-12  # torch F.normalize default


def _l2norm_kernel(x_ref, o_ref):
    # x_ref: (t_n, C, t_hw) tile; normalize each (n, :, hw) column over channels.
    x = x_ref[...].astype(jnp.float32)                 # f32 accumulate (bf16-safe)
    sumsq = jnp.sum(x * x, axis=1, keepdims=True)      # reduce over C (sublane/XLU)
    # max(||x||, eps) == sqrt(max(sumsq, eps^2)); eps^2 = 1e-24 is a normal f32.
    inv = lax.rsqrt(jnp.maximum(sumsq, jnp.float32(EPS * EPS)))   # EUP slot
    o_ref[...] = (x * inv).astype(o_ref.dtype)         # single cast on store


def _chip_config():
    """Per-generation (vmem_limit_bytes, target_tile_bytes, want_multi_step)."""
    vmem_phys = 128 << 20
    try:
        info = pltpu.get_tpu_info()
        vmem_phys = int(getattr(info, "vmem_capacity_bytes", vmem_phys))
    except Exception:
        pass  # conservative fallback below if the query is unavailable
    if vmem_phys <= (64 << 20):
        # v7x: 64 MiB physical VMEM per TC, 2 TensorCores per chip.
        return 48 << 20, 6 << 20, True
    # v5e / v6e: 128 MiB VMEM, single TensorCore. 8 MiB tiles already sit on
    # the HBM roofline for both; explicit 64 MiB limit keeps it portable.
    return 64 << 20, 8 << 20, False


def _pick_tiles(n, c, hw, dtype, *, vmem_limit_bytes, target_tile_bytes,
                want_multi_step):
    """Choose (t_n, t_hw) for one (t_n, C, t_hw) tile, lane axis dense."""
    itemsize = jnp.dtype(dtype).itemsize
    # Sublane packing: one vreg holds 8 f32 / 16 bf16 / 32 int8 rows, so the
    # channel axis occupies the padded count in VMEM.
    sublane = 8 * max(1, 4 // itemsize)
    c_pad = pl.cdiv(c, sublane) * sublane

    # Live-VMEM multiplier per tile: double-buffered input + output (4x tile)
    # plus ~2 f32 temporaries from astype(f32) when the I/O dtype is narrower.
    live_factor = 4 + (8 // itemsize if itemsize < 4 else 1)
    max_tile_bytes = max(1, int(0.85 * vmem_limit_bytes) // live_factor)
    tile_budget = max(1, min(target_tile_bytes, max_tile_bytes))

    bytes_per_col = c_pad * itemsize                     # one HW column, padded C
    max_lanes = max(128, (tile_budget // bytes_per_col) // 128 * 128)

    if hw > max_lanes:
        t_hw, t_n = max_lanes, 1                         # 128-multiple -> unmasked vst
    else:
        # TODO(synk): for very small HW (< 128) the output stores are masked
        # (vst.msk); folding N*HW onto the lane axis would need a wrapper-side
        # transpose, which costs an extra HBM round trip and is not worth it
        # for the typical HW >= 128 feature maps this module sees.
        t_hw = hw                                        # full-dim block (no 128 rule)
        per_image = bytes_per_col * hw
        t_n = max(1, min(n, tile_budget // max(per_image, 1)))

    if want_multi_step:
        # v7x: guarantee >= 2 grid steps so both TensorCores get work, even for
        # N == 1 / single-tile inputs.
        if pl.cdiv(n, t_n) * pl.cdiv(hw, t_hw) < 2:
            if n >= 2:
                t_n = max(1, -(-n // 2))                 # ceil(n / 2)
            elif t_hw > 128:
                t_hw = max(128, ((t_hw // 2) // 128) * 128)
            # else: genuinely tiny single-tile input; one step is the only option.
    return t_n, t_hw


def l2norm(x, dim=1):
    """Equivalent of torch F.normalize(x, p=2, dim=1) for a 4-D NCHW tensor."""
    assert x.ndim == 4 and dim == 1, "this implementation covers the NCHW / dim=1 case"
    N, C, H, W = x.shape
    HW = H * W
    x3 = x.reshape(N, C, HW)            # contiguous reshape: no transpose, no pad

    vmem_limit, target_tile, want_multi_step = _chip_config()
    t_n, t_hw = _pick_tiles(N, C, HW, x.dtype,
                            vmem_limit_bytes=vmem_limit,
                            target_tile_bytes=target_tile,
                            want_multi_step=want_multi_step)
    grid = (pl.cdiv(N, t_n), pl.cdiv(HW, t_hw))

    itemsize = jnp.dtype(x.dtype).itemsize
    cost = pl.CostEstimate(
        flops=3 * N * C * HW,                 # square + add + scale per element
        transcendentals=N * HW,               # one rsqrt per spatial column
        bytes_accessed=2 * N * C * HW * itemsize,
    )

    out = pl.pallas_call(
        _l2norm_kernel,
        out_shape=jax.ShapeDtypeStruct((N, C, HW), x.dtype),
        grid_spec=pltpu.PrefetchScalarGridSpec(
            num_scalar_prefetch=0,
            grid=grid,
            in_specs=[pl.BlockSpec((t_n, C, t_hw), lambda i, j: (i, 0, j))],
            out_specs=pl.BlockSpec((t_n, C, t_hw), lambda i, j: (i, 0, j)),
        ),
        compiler_params=pltpu.CompilerParams(
            dimension_semantics=("parallel", "parallel"),
            vmem_limit_bytes=vmem_limit,
        ),
        cost_estimate=cost,
    )(x3)
    return out.reshape(N, C, H, W)


if __name__ == "__main__":
    key = jax.random.PRNGKey(0)
    # Small NCHW input consistent with the module's usage (dim=1 = channels).
    x = jax.random.normal(key, (2, 4, 16, 16), dtype=jnp.float32)

    y = l2norm(x, dim=1)
    jax.block_until_ready(y)

    # Reference check against plain JAX (same semantics as F.normalize).
    norm = jnp.sqrt(jnp.sum(x * x, axis=1, keepdims=True))
    ref = x / jnp.maximum(norm, EPS)
    assert jnp.allclose(y, ref, atol=1e-5, rtol=1e-5), "mismatch vs reference"

    print("KERNEL_OK")
</pallas_src>

<mosaic_0001>
module attributes {stable_mosaic.version = 11 : i64} {
  func.func @_l2norm_kernel(%arg0: i32, %arg1: i32, %arg2: memref<2x4x256xf32, #tpu.memory_space<vmem>>, %arg3: memref<2x4x256xf32, #tpu.memory_space<vmem>>) attributes {dimension_semantics = [#tpu.dimension_semantics<parallel>, #tpu.dimension_semantics<parallel>], iteration_bounds = array<i64: 1, 1>, scalar_prefetch = 0 : i64, scratch_operands = 0 : i64, tpu.core_type = #tpu.core_type<tc>, window_params = [{transform_indices = @transform_0, window_bounds = array<i64: 2, 4, 256>}, {transform_indices = @transform_1, window_bounds = array<i64: 2, 4, 256>}]} {
    %c0 = arith.constant 0 : index
    %c0_0 = arith.constant 0 : index
    %c0_1 = arith.constant 0 : index
    %0 = vector.load %arg2[%c0, %c0_0, %c0_1] : memref<2x4x256xf32, #tpu.memory_space<vmem>>, vector<2x4x256xf32>
    %1 = arith.mulf %0, %0 : vector<2x4x256xf32>
    %cst = arith.constant dense<0.000000e+00> : vector<2x256xf32>
    %2 = vector.multi_reduction <add>, %1, %cst [1] : vector<2x4x256xf32> to vector<2x256xf32>
    %3 = vector.shape_cast %2 : vector<2x256xf32> to vector<2x1x256xf32>
    %cst_2 = arith.constant 1.000000e-24 : f32
    %4 = vector.broadcast %cst_2 : f32 to vector<2x1x256xf32>
    %5 = arith.maximumf %3, %4 : vector<2x1x256xf32>
    %6 = math.rsqrt %5 : vector<2x1x256xf32>
    %7 = vector.broadcast %6 : vector<2x1x256xf32> to vector<2x4x256xf32>
    %8 = arith.mulf %0, %7 : vector<2x4x256xf32>
    %c0_3 = arith.constant 0 : index
    %c0_4 = arith.constant 0 : index
    %c0_5 = arith.constant 0 : index
    %9 = vector.load %arg3[%c0_3, %c0_4, %c0_5] : memref<2x4x256xf32, #tpu.memory_space<vmem>>, vector<2x4x256xf32>
    tpu.vector_store %arg3[%c0_3, %c0_4, %c0_5], %8 {strides = array<i32>} : memref<2x4x256xf32, #tpu.memory_space<vmem>>, vector<2x4x256xf32>,
    return
  }
  func.func @transform_0(%arg0: i32, %arg1: i32) -> (i32, i32, i32) {
    %c0_i32 = arith.constant 0 : i32
    %c0_i32_0 = arith.constant 0 : i32
    return %arg0, %c0_i32, %arg1 : i32, i32, i32
  }
  func.func @transform_1(%arg0: i32, %arg1: i32) -> (i32, i32, i32) {
    %c0_i32 = arith.constant 0 : i32
    %c0_i32_0 = arith.constant 0 : i32
    return %arg0, %c0_i32, %arg1 : i32, i32, i32
  }
}

</mosaic_0001>

<llo_original>
// kernel: tpu_custom_call.1
$region0: #{tpu_custom_call.1}
  #allocation0 [shape = 'u32[]', space=smem, size = 0x4, offset = 0x4, fixed_abs, tag = 'smem constant byte address 0x4 - core index']
  #allocation1 [shape = 'u32[144,128]{1,0:T(1,128)}', space=vmem, size = 0x12000, scoped, tag = 'internal scratch']
  %s0 = inlined_call_operand.hbm [shape: f32[2,4,256], index: 0, kind: input, shape index: {}]
  %s1 = inlined_call_operand.hbm [shape: f32[2,4,256], index: 1, kind: output, shape index: {}]
  %s2 = sld [smem:[#allocation0]]
  $region18: #{tpu_custom_call.1} parent=0
    _
  %s4 = ssub.s32 1, %s2
  %s5 = scalar_select 0, %s4, %s2
  $region1: #{tpu_custom_call.1} parent=0
    #allocation2 [shape = 'u8[8192]{0}', space=vmem, size = 0x2000, scoped, tag = 'input window, operand 0, single buffered']
    #allocation3 [shape = 's32[1]{0}', space=sflag, size = 0x4, scoped, tag = 'scoped memory for tpu_custom_call.1']
    #allocation4 [shape = 's32[1]{0}', space=sflag, size = 0x4, scoped, tag = 'scoped memory for tpu_custom_call.1']
    #allocation5 [shape = 'u8[8192]{0}', space=vmem, size = 0x2000, scoped, tag = 'output window, operand 0, single buffered']
    %6 = vsyncpa [#allocation3], 0
    %7 = vsyncpa [#allocation4], 0
    // Predicated region
    $region2: #{tpu_custom_call.1} parent=1 // pred_check
      _
    $region3: #{tpu_custom_call.1} parent=1 // pred_check_branch
      %9 = sbr.rel (0) target = $region5
    $region4: #{tpu_custom_call.1} parent=1 // pred_region
      %s11 = ssub.s32 256, 256
      %12 = vsyncadd [#allocation3], %s11
      %s13 = sshll.u32 [#allocation2], 4
      %s14 = int_to_ptr.vmem [resolvable:$true] %s13
      %19 = dma.hbm_to_vmem [thread:$0]  %s0, 256, %s14, [#allocation3], 128, 128, 8
    $region5: #{tpu_custom_call.1} parent=1 // pred_fallthru
      _
    // Predicated region
    $region6: #{tpu_custom_call.1} parent=1 // pred_check
      _
    $region7: #{tpu_custom_call.1} parent=1 // pred_check_branch
      %21 = sbr.rel (0) target = $region9
    $region8: #{tpu_custom_call.1} parent=1 // pred_region
      %22 = dma.done [#allocation3], 256
    $region9: #{tpu_custom_call.1} parent=1 // pred_fallthru
      _
    %v23 = vld [vmem:[#allocation2] sm:$0xff]
    %v24 = vld [vmem:[#allocation2 + $0x8] sm:$0xff]
    %v25 = vmul.f32 %v23, %v23
    %v26 = vmul.f32 %v24, %v24
    %v29 = vcombine.high %v25, %v25
    %v30 = vcombine.high %v26, %v26
    %vm33 = vcmask 1043456
    %v34 = vsel %vm33, %v25, 0.0
    %v35 = vrot.slane %v34, 4
    %v36 = vadd.f32 %v34, %v35
    %v37 = vrot.slane %v36, 2
    %v38 = vadd.f32 %v36, %v37
    %v39 = vrot.slane %v38, 1
    %v40 = vadd.f32 %v38, %v39
    %v41 = vsel %vm33, %v29, 0.0
    %v42 = vrot.slane %v41, 4
    %v43 = vadd.f32 %v41, %v42
    %v44 = vrot.slane %v43, 2
    %v45 = vadd.f32 %v43, %v44
    %v46 = vrot.slane %v45, 1
    %v47 = vadd.f32 %v45, %v46
    %v48 = vsel %vm33, %v26, 0.0
    %v49 = vrot.slane %v48, 4
    %v50 = vadd.f32 %v48, %v49
    %v51 = vrot.slane %v50, 2
    %v52 = vadd.f32 %v50, %v51
    %v53 = vrot.slane %v52, 1
    %v54 = vadd.f32 %v52, %v53
    %v55 = vsel %vm33, %v30, 0.0
    %v56 = vrot.slane %v55, 4
    %v57 = vadd.f32 %v55, %v56
    %v58 = vrot.slane %v57, 2
    %v59 = vadd.f32 %v57, %v58
    %v60 = vrot.slane %v59, 1
    %v61 = vadd.f32 %v59, %v60
    %v62 = vmax.f32 %v40, 1e-24
    %v63 = vmax.f32 %v47, 1e-24
    %v64 = vmax.f32 %v54, 1e-24
    %v65 = vmax.f32 %v61, 1e-24
    %v66 = vrsqrt.pop %v62
    %v67 = vrsqrt.pop %v63
    %v68 = vrsqrt.pop %v64
    %v69 = vrsqrt.pop %v65
    %v74 = vcombine.low %v66, %v67
    %v75 = vcombine.low %v68, %v69
    %v78 = vmul.f32 %v23, %v74
    %v79 = vmul.f32 %v24, %v75
    %80 = vst [vmem:[#allocation5] sm:$0xff] %v78
    %81 = vst [vmem:[#allocation5 + $0x8] sm:$0xff] %v79
    // Predicated region
    $region10: #{tpu_custom_call.1} parent=1 // pred_check
      _
    $region11: #{tpu_custom_call.1} parent=1 // pred_check_branch
      %83 = sbr.rel (0) target = $region13
    $region12: #{tpu_custom_call.1} parent=1 // pred_region
      %s85 = ssub.s32 256, 256
      %86 = vsyncadd [#allocation4], %s85
      %s87 = sshll.u32 [#allocation5], 4
      %s88 = int_to_ptr.vmem [resolvable:$true] %s87
      %93 = dma.vmem_to_hbm [thread:$0]  %s88, 256, %s1, [#allocation4], 128, 128, 8
    $region13: #{tpu_custom_call.1} parent=1 // pred_fallthru
      _
    // Predicated region
    $region14: #{tpu_custom_call.1} parent=1 // pred_check
      _
    $region15: #{tpu_custom_call.1} parent=1 // pred_check_branch
      %95 = sbr.rel (0) target = $region17
    $region16: #{tpu_custom_call.1} parent=1 // pred_region
      %96 = dma.done [#allocation4], 256
    $region17: #{tpu_custom_call.1} parent=1 // pred_fallthru
      _
    %97 = vsyncpa [#allocation3], 1
    %98 = vsyncpa [#allocation4], 1

</llo_original>
